<compile_context>
chip_gen: v6e
topology: v6e:2x2x1
jax: 0.10.0
libtpu: 0.0.40
codegen_flags: <defaults>
</compile_context>

<pallas_src>
import functools
import math

import jax
import jax.numpy as jnp
from jax.experimental import pallas as pl
from jax.experimental.pallas import tpu as pltpu


def _cti_kernel(fea_ref, gamma_ref, beta_ref, wq_ref, wkvp_ref, bp_ref,
                out_ref, attn_ref, *, n, c, eps):
    block_b = fea_ref.shape[0]

    gamma = gamma_ref[...]                       # (1, C)  f32
    beta = beta_ref[...]                         # (1, C)  f32
    wq = wq_ref[...]                             # (C, C)  MXU dtype
    wkvp = wkvp_ref[...]                         # (C, 2C) [Wk*scale | Wv@Wp]
    bp = bp_ref[...]                             # (1, C)  f32
    mxu_dtype = wq.dtype

    for j in range(block_b):                     # static unroll over the batch sub-block
        fea = fea_ref[j].astype(jnp.float32)     # (N, C)

        # LayerNorm over C (f32 statistics, biased variance — PyTorch semantics).
        mean = jnp.mean(fea, axis=-1, keepdims=True)
        var = jnp.mean((fea - mean) ** 2, axis=-1, keepdims=True)
        x = (fea - mean) * jax.lax.rsqrt(var + eps) * gamma + beta
        xc = x.astype(mxu_dtype)                 # (N, C)

        # Contour token T_s = row N-2 (single-row read, not a big offset slice).
        t = xc[n - 2:n - 1, :]                   # (1, C)

        # Fused [k | v@Wp] projection; attention `scale` is folded into Wk.
        kvp = jnp.dot(t, wkvp, preferred_element_type=jnp.float32)   # (1, 2C)
        k = kvp[:, :c]                           # (1, C)
        vp = kvp[:, c:]                          # (1, C) == v @ Wp

        # q projection over ALL N rows (3 wasted rows << cost of offset-1 slices).
        q = jnp.dot(xc, wq, preferred_element_type=jnp.float32)      # (N, C) f32

        # Attention logits vs. the single contour token, in two layouts:
        #   column (N, 1): drives the rank-1 value update
        #   row    (1, N): lane-dense layout for the attn output store
        logits_col = jnp.sum(q * k, axis=-1, keepdims=True)          # (N, 1)
        logits_row = jax.lax.dot_general(                            # (1, N)
            k, q, (((1,), (1,)), ((), ())),
            preferred_element_type=jnp.float32)
        attn_col = jax.nn.sigmoid(logits_col)
        attn_row = jax.nn.sigmoid(logits_row)

        # num_heads == 1  =>  (attn @ v) @ Wp + b == attn * (v @ Wp) + b.
        infer = attn_col * vp + bp + fea         # (N, C) f32, rows aligned

        # Single shifted store of the valid query rows [1, N-2).
        out_ref[j] = infer[1:n - 2, :].astype(out_ref.dtype)          # (M, C)
        attn_ref[j] = attn_row[:, 1:n - 2].astype(attn_ref.dtype)     # (1, M)


def _pick_block_b(batch, max_block=8):
    """Largest divisor of `batch` <= max_block that keeps grid extent >= 2
    (so both v7x TensorCores get work); falls back to 1."""
    best = 1
    for cand in range(1, min(batch, max_block) + 1):
        if batch % cand == 0 and batch // cand >= 2:
            best = cand
    return best


def contour_token_inference(fea, gamma, beta, wq, wk, wv, wp, bp,
                            num_heads=1, qk_scale=None, *,
                            block_b=None, use_bf16_matmul=True):
    """Pallas forward of the PyTorch contour_token_inference module (eval mode).

    Only num_heads == 1 is supported (the module's final attn.reshape to
    (B, sqrt(N-3), sqrt(N-3)) only makes sense for a single head).
    """
    # TODO(synk): generalize to num_heads > 1 if the module's attn reshape is ever fixed.
    assert num_heads == 1
    B, N, C = fea.shape
    M = N - 3
    s = int(math.sqrt(M))
    assert s * s == M, "N - 3 must be a perfect square for the attn reshape"
    scale = qk_scale if qk_scale is not None else (C // num_heads) ** (-0.5)

    mxu_dtype = jnp.bfloat16 if use_bf16_matmul else jnp.float32

    # Weight preprocessing (once per call; constant-folded for static weights):
    # fold `scale` into Wk, fold the output projection into Wv (exact for a
    # single head), fuse into one (C, 2C) matrix, and cast to the MXU dtype.
    # NOTE: for C < 128 the lane axis is under-filled; packing several batch
    # items into the lane axis would be needed to use all 128 lanes.
    wk_scaled = jnp.asarray(wk, jnp.float32) * scale
    wvp = jnp.dot(jnp.asarray(wv, jnp.float32), jnp.asarray(wp, jnp.float32),
                  precision=jax.lax.Precision.HIGHEST)
    wkvp = jnp.concatenate([wk_scaled, wvp], axis=-1).astype(mxu_dtype)  # (C, 2C)
    wq_c = jnp.asarray(wq).astype(mxu_dtype)                             # (C, C)
    gamma2 = jnp.asarray(gamma, jnp.float32).reshape(1, C)
    beta2 = jnp.asarray(beta, jnp.float32).reshape(1, C)
    bp2 = jnp.asarray(bp, jnp.float32).reshape(1, C)

    bb = _pick_block_b(B) if block_b is None else block_b
    assert B % bb == 0, "block_b must divide the batch"
    grid = (B // bb,)

    # Rough VMEM budget (double-buffered blocks + live f32 intermediates) so
    # large C / block_b do not trip the default scoped limit (16 MiB v5e,
    # 32 MiB v6e/v7x); capped below v7x's 64 MiB physical VMEM.
    itemsize = jnp.dtype(fea.dtype).itemsize
    wsize = jnp.dtype(mxu_dtype).itemsize
    est = (2 * bb * N * C * itemsize                     # fea blocks
           + 2 * 3 * C * C * wsize                       # Wq + [Wk|Wv@Wp]
           + 2 * (bb * M * C * itemsize + bb * M * 4)    # outputs
           + 6 * bb * N * C * 4 + 8 * C * 4)             # live intermediates
    vmem_limit = int(min(56 * 2 ** 20, max(32 * 2 ** 20, 1.5 * est)))

    kernel = functools.partial(_cti_kernel, n=N, c=C, eps=1e-5)

    out_shapes = (
        jax.ShapeDtypeStruct((B, M, C), fea.dtype),      # infer_fea
        jax.ShapeDtypeStruct((B, 1, M), jnp.float32),    # attn, lane-dense in M
    )

    grid_spec = pltpu.PrefetchScalarGridSpec(
        num_scalar_prefetch=0,
        grid=grid,
        in_specs=[
            pl.BlockSpec((bb, N, C), lambda b: (b, 0, 0)),    # fea
            pl.BlockSpec((1, C), lambda b: (0, 0)),           # LN gamma
            pl.BlockSpec((1, C), lambda b: (0, 0)),           # LN beta
            pl.BlockSpec((C, C), lambda b: (0, 0)),           # Wq
            pl.BlockSpec((C, 2 * C), lambda b: (0, 0)),       # [Wk*scale | Wv@Wp]
            pl.BlockSpec((1, C), lambda b: (0, 0)),           # proj bias
        ],
        out_specs=[
            pl.BlockSpec((bb, M, C), lambda b: (b, 0, 0)),
            pl.BlockSpec((bb, 1, M), lambda b: (b, 0, 0)),
        ],
    )

    infer_fea, attn = pl.pallas_call(
        kernel,
        out_shape=out_shapes,
        grid_spec=grid_spec,
        compiler_params=pltpu.CompilerParams(
            dimension_semantics=("parallel",),
            vmem_limit_bytes=vmem_limit),
    )(fea, gamma2, beta2, wq_c, wkvp, bp2)

    return infer_fea, attn.reshape(B, s, s)


def _reference(fea, gamma, beta, wq, wk, wv, wp, bp):
    """Pure-JAX reference mirroring the PyTorch forward (num_heads=1)."""
    B, N, C = fea.shape
    scale = C ** (-0.5)
    mean = jnp.mean(fea, axis=-1, keepdims=True)
    var = jnp.mean((fea - mean) ** 2, axis=-1, keepdims=True)
    x = (fea - mean) / jnp.sqrt(var + 1e-5) * gamma + beta
    t_s = x[:, N - 2:N - 1, :]                       # (B, 1, C)
    f_s = x[:, 1:N - 2, :]                           # (B, M, C)
    q = f_s @ wq
    k = t_s @ wk
    v = t_s @ wv
    attn = jax.nn.sigmoid(jnp.einsum("bmc,bkc->bmk", q, k) * scale)  # (B, M, 1)
    infer = jnp.einsum("bmk,bkc->bmc", attn, v)
    infer = infer @ wp + bp
    infer = infer + fea[:, 1:N - 2, :]
    s = int(math.sqrt(N - 3))
    return infer, attn.reshape(B, s, s)


if __name__ == "__main__":
    B, C = 2, 32
    M = 16                    # N - 3 must be a perfect square
    N = M + 3                 # 19

    key = jax.random.PRNGKey(0)
    keys = jax.random.split(key, 8)
    fea = jax.random.normal(keys[0], (B, N, C), dtype=jnp.float32)
    gamma = 1.0 + 0.1 * jax.random.normal(keys[6], (1, C), dtype=jnp.float32)
    beta = 0.1 * jax.random.normal(keys[7], (1, C), dtype=jnp.float32)
    init = 1.0 / math.sqrt(C)
    wq = jax.random.uniform(keys[1], (C, C), jnp.float32, -init, init)
    wk = jax.random.uniform(keys[2], (C, C), jnp.float32, -init, init)
    wv = jax.random.uniform(keys[3], (C, C), jnp.float32, -init, init)
    wp = jax.random.uniform(keys[4], (C, C), jnp.float32, -init, init)
    bp = jax.random.uniform(keys[5], (1, C), jnp.float32, -init, init)

    ref_fea, ref_attn = _reference(fea, gamma, beta, wq, wk, wv, wp, bp)

    # Exact path (f32 MXU) — tight tolerance against the PyTorch-equivalent ref.
    out32, attn32 = contour_token_inference(
        fea, gamma, beta, wq, wk, wv, wp, bp, use_bf16_matmul=False)
    jax.block_until_ready((out32, attn32))
    assert out32.shape == (B, M, C) and attn32.shape == (B, 4, 4)
    assert jnp.allclose(out32, ref_fea, rtol=1e-4, atol=1e-4)
    assert jnp.allclose(attn32, ref_attn, rtol=1e-4, atol=1e-4)

    # Default fast path (bf16 MXU matmuls, f32 accumulation) — bf16 tolerance.
    out16, attn16 = contour_token_inference(fea, gamma, beta, wq, wk, wv, wp, bp)
    jax.block_until_ready((out16, attn16))
    assert out16.shape == (B, M, C) and attn16.shape == (B, 4, 4)
    assert jnp.allclose(out16, ref_fea, rtol=2e-2, atol=2e-2)
    assert jnp.allclose(attn16, ref_attn, rtol=2e-2, atol=2e-2)

    print("KERNEL_OK")
</pallas_src>

<mosaic_0001>
module attributes {stable_mosaic.version = 11 : i64} {
  func.func @_cti_kernel(%arg0: i32, %arg1: memref<1x19x32xf32, #tpu.memory_space<vmem>>, %arg2: memref<1x32xf32, #tpu.memory_space<vmem>>, %arg3: memref<1x32xf32, #tpu.memory_space<vmem>>, %arg4: memref<32x32xf32, #tpu.memory_space<vmem>>, %arg5: memref<32x64xf32, #tpu.memory_space<vmem>>, %arg6: memref<1x32xf32, #tpu.memory_space<vmem>>, %arg7: memref<1x16x32xf32, #tpu.memory_space<vmem>>, %arg8: memref<1x1x16xf32, #tpu.memory_space<vmem>>) attributes {dimension_semantics = [#tpu.dimension_semantics<parallel>], iteration_bounds = array<i64: 2>, scalar_prefetch = 0 : i64, scratch_operands = 0 : i64, tpu.core_type = #tpu.core_type<tc>, window_params = [{transform_indices = @transform_0, window_bounds = array<i64: 1, 19, 32>}, {pipeline_mode = #tpu.pipeline_mode<synchronous>, transform_indices = @transform_1, window_bounds = array<i64: 1, 32>}, {pipeline_mode = #tpu.pipeline_mode<synchronous>, transform_indices = @transform_2, window_bounds = array<i64: 1, 32>}, {pipeline_mode = #tpu.pipeline_mode<synchronous>, transform_indices = @transform_3, window_bounds = array<i64: 32, 32>}, {pipeline_mode = #tpu.pipeline_mode<synchronous>, transform_indices = @transform_4, window_bounds = array<i64: 32, 64>}, {pipeline_mode = #tpu.pipeline_mode<synchronous>, transform_indices = @transform_5, window_bounds = array<i64: 1, 32>}, {transform_indices = @transform_6, window_bounds = array<i64: 1, 16, 32>}, {transform_indices = @transform_7, window_bounds = array<i64: 1, 1, 16>}]} {
    %c0 = arith.constant 0 : index
    %c0_0 = arith.constant 0 : index
    %0 = vector.load %arg2[%c0, %c0_0] : memref<1x32xf32, #tpu.memory_space<vmem>>, vector<1x32xf32>
    %c0_1 = arith.constant 0 : index
    %c0_2 = arith.constant 0 : index
    %1 = vector.load %arg3[%c0_1, %c0_2] : memref<1x32xf32, #tpu.memory_space<vmem>>, vector<1x32xf32>
    %c0_3 = arith.constant 0 : index
    %c0_4 = arith.constant 0 : index
    %2 = vector.load %arg4[%c0_3, %c0_4] : memref<32x32xf32, #tpu.memory_space<vmem>>, vector<32x32xf32>
    %c0_5 = arith.constant 0 : index
    %c0_6 = arith.constant 0 : index
    %3 = vector.load %arg5[%c0_5, %c0_6] : memref<32x64xf32, #tpu.memory_space<vmem>>, vector<32x64xf32>
    %c0_7 = arith.constant 0 : index
    %c0_8 = arith.constant 0 : index
    %4 = vector.load %arg6[%c0_7, %c0_8] : memref<1x32xf32, #tpu.memory_space<vmem>>, vector<1x32xf32>
    %c0_9 = arith.constant 0 : index
    %c0_10 = arith.constant 0 : index
    %c0_11 = arith.constant 0 : index
    %5 = vector.load %arg1[%c0_9, %c0_10, %c0_11] : memref<1x19x32xf32, #tpu.memory_space<vmem>>, vector<1x19x32xf32>
    %6 = vector.shape_cast %5 : vector<1x19x32xf32> to vector<19x32xf32>
    %cst = arith.constant dense<0.000000e+00> : vector<19xf32>
    %7 = vector.multi_reduction <add>, %6, %cst [1] : vector<19x32xf32> to vector<19xf32>
    %8 = vector.shape_cast %7 : vector<19xf32> to vector<19x1xf32>
    %cst_12 = arith.constant 3.200000e+01 : f32
    %9 = vector.broadcast %cst_12 : f32 to vector<19x1xf32>
    %10 = arith.divf %8, %9 : vector<19x1xf32>
    %11 = vector.broadcast %10 : vector<19x1xf32> to vector<19x32xf32>
    %12 = arith.subf %6, %11 : vector<19x32xf32>
    %13 = arith.mulf %12, %12 : vector<19x32xf32>
    %cst_13 = arith.constant dense<0.000000e+00> : vector<19xf32>
    %14 = vector.multi_reduction <add>, %13, %cst_13 [1] : vector<19x32xf32> to vector<19xf32>
    %15 = vector.shape_cast %14 : vector<19xf32> to vector<19x1xf32>
    %cst_14 = arith.constant 3.200000e+01 : f32
    %16 = vector.broadcast %cst_14 : f32 to vector<19x1xf32>
    %17 = arith.divf %15, %16 : vector<19x1xf32>
    %18 = vector.broadcast %10 : vector<19x1xf32> to vector<19x32xf32>
    %19 = arith.subf %6, %18 : vector<19x32xf32>
    %cst_15 = arith.constant 9.99999974E-6 : f32
    %20 = vector.broadcast %cst_15 : f32 to vector<19x1xf32>
    %21 = arith.addf %17, %20 : vector<19x1xf32>
    %22 = math.rsqrt %21 : vector<19x1xf32>
    %23 = vector.broadcast %22 : vector<19x1xf32> to vector<19x32xf32>
    %24 = arith.mulf %19, %23 : vector<19x32xf32>
    %25 = vector.broadcast %0 : vector<1x32xf32> to vector<19x32xf32>
    %26 = arith.mulf %24, %25 : vector<19x32xf32>
    %27 = vector.broadcast %1 : vector<1x32xf32> to vector<19x32xf32>
    %28 = arith.addf %26, %27 : vector<19x32xf32>
    %29 = vector.extract_strided_slice %28 {offsets = [17, 0], sizes = [1, 32], strides = [1, 1]} : vector<19x32xf32> to vector<1x32xf32>
    %cst_16 = arith.constant dense<0.000000e+00> : vector<1x64xf32>
    %30 = tpu.matmul %29, %3, %cst_16 {dimension_numbers = #tpu.dot_dimension_numbers<[1], [0], [0], [1], [0, 0, 1, 1], [], []>} : vector<1x32xf32>, vector<32x64xf32>, vector<1x64xf32> -> vector<1x64xf32>
    %31 = vector.extract_strided_slice %30 {offsets = [0, 0], sizes = [1, 32], strides = [1, 1]} : vector<1x64xf32> to vector<1x32xf32>
    %32 = vector.extract_strided_slice %30 {offsets = [0, 32], sizes = [1, 32], strides = [1, 1]} : vector<1x64xf32> to vector<1x32xf32>
    %cst_17 = arith.constant dense<0.000000e+00> : vector<19x32xf32>
    %33 = tpu.matmul %28, %2, %cst_17 {dimension_numbers = #tpu.dot_dimension_numbers<[1], [0], [0], [1], [0, 0, 1, 1], [], []>} : vector<19x32xf32>, vector<32x32xf32>, vector<19x32xf32> -> vector<19x32xf32>
    %34 = vector.broadcast %31 : vector<1x32xf32> to vector<19x32xf32>
    %35 = arith.mulf %33, %34 : vector<19x32xf32>
    %cst_18 = arith.constant dense<0.000000e+00> : vector<19xf32>
    %36 = vector.multi_reduction <add>, %35, %cst_18 [1] : vector<19x32xf32> to vector<19xf32>
    %37 = vector.shape_cast %36 : vector<19xf32> to vector<19x1xf32>
    %cst_19 = arith.constant dense<0.000000e+00> : vector<1x19xf32>
    %38 = tpu.matmul %31, %33, %cst_19 {dimension_numbers = #tpu.dot_dimension_numbers<[1], [1], [0], [0], [0, 0, 1, 0], [], []>} : vector<1x32xf32>, vector<19x32xf32>, vector<1x19xf32> -> vector<1x19xf32>
    %39 = arith.negf %37 : vector<19x1xf32>
    %40 = math.exp %39 : vector<19x1xf32>
    %cst_20 = arith.constant 1.000000e+00 : f32
    %41 = vector.broadcast %cst_20 : f32 to vector<19x1xf32>
    %42 = arith.addf %41, %40 : vector<19x1xf32>
    %43 = arith.divf %41, %42 : vector<19x1xf32>
    %44 = arith.negf %38 : vector<1x19xf32>
    %45 = math.exp %44 : vector<1x19xf32>
    %cst_21 = arith.constant 1.000000e+00 : f32
    %46 = vector.broadcast %cst_21 : f32 to vector<1x19xf32>
    %47 = arith.addf %46, %45 : vector<1x19xf32>
    %48 = arith.divf %46, %47 : vector<1x19xf32>
    %49 = vector.broadcast %43 : vector<19x1xf32> to vector<19x32xf32>
    %50 = vector.broadcast %32 : vector<1x32xf32> to vector<19x32xf32>
    %51 = arith.mulf %49, %50 : vector<19x32xf32>
    %52 = vector.broadcast %4 : vector<1x32xf32> to vector<19x32xf32>
    %53 = arith.addf %51, %52 : vector<19x32xf32>
    %54 = arith.addf %53, %6 : vector<19x32xf32>
    %55 = vector.extract_strided_slice %54 {offsets = [1, 0], sizes = [16, 32], strides = [1, 1]} : vector<19x32xf32> to vector<16x32xf32>
    %c0_22 = arith.constant 0 : index
    %c0_23 = arith.constant 0 : index
    %c0_24 = arith.constant 0 : index
    %56 = vector.load %arg7[%c0_22, %c0_23, %c0_24] : memref<1x16x32xf32, #tpu.memory_space<vmem>>, vector<1x16x32xf32>
    %57 = vector.shape_cast %56 : vector<1x16x32xf32> to vector<16x32xf32>
    %58 = vector.shape_cast %55 : vector<16x32xf32> to vector<1x16x32xf32>
    tpu.vector_store %arg7[%c0_22, %c0_23, %c0_24], %58 {strides = array<i32>} : memref<1x16x32xf32, #tpu.memory_space<vmem>>, vector<1x16x32xf32>,
    %59 = vector.extract_strided_slice %48 {offsets = [0, 1], sizes = [1, 16], strides = [1, 1]} : vector<1x19xf32> to vector<1x16xf32>
    %c0_25 = arith.constant 0 : index
    %c0_26 = arith.constant 0 : index
    %c0_27 = arith.constant 0 : index
    %60 = vector.load %arg8[%c0_25, %c0_26, %c0_27] : memref<1x1x16xf32, #tpu.memory_space<vmem>>, vector<1x1x16xf32>
    %61 = vector.shape_cast %60 : vector<1x1x16xf32> to vector<1x16xf32>
    %62 = vector.shape_cast %59 : vector<1x16xf32> to vector<1x1x16xf32>
    tpu.vector_store %arg8[%c0_25, %c0_26, %c0_27], %62 {strides = array<i32>} : memref<1x1x16xf32, #tpu.memory_space<vmem>>, vector<1x1x16xf32>,
    return
  }
  func.func @transform_0(%arg0: i32) -> (i32, i32, i32) {
    %c0_i32 = arith.constant 0 : i32
    %c0_i32_0 = arith.constant 0 : i32
    %c0_i32_1 = arith.constant 0 : i32
    return %arg0, %c0_i32, %c0_i32_0 : i32, i32, i32
  }
  func.func @transform_1(%arg0: i32) -> (i32, i32) {
    %c0_i32 = arith.constant 0 : i32
    %c0_i32_0 = arith.constant 0 : i32
    %c0_i32_1 = arith.constant 0 : i32
    return %c0_i32, %c0_i32_0 : i32, i32
  }
  func.func @transform_2(%arg0: i32) -> (i32, i32) {
    %c0_i32 = arith.constant 0 : i32
    %c0_i32_0 = arith.constant 0 : i32
    %c0_i32_1 = arith.constant 0 : i32
    return %c0_i32, %c0_i32_0 : i32, i32
  }
  func.func @transform_3(%arg0: i32) -> (i32, i32) {
    %c0_i32 = arith.constant 0 : i32
    %c0_i32_0 = arith.constant 0 : i32
    %c0_i32_1 = arith.constant 0 : i32
    return %c0_i32, %c0_i32_0 : i32, i32
  }
  func.func @transform_4(%arg0: i32) -> (i32, i32) {
    %c0_i32 = arith.constant 0 : i32
    %c0_i32_0 = arith.constant 0 : i32
    %c0_i32_1 = arith.constant 0 : i32
    return %c0_i32, %c0_i32_0 : i32, i32
  }
  func.func @transform_5(%arg0: i32) -> (i32, i32) {
    %c0_i32 = arith.constant 0 : i32
    %c0_i32_0 = arith.constant 0 : i32
    %c0_i32_1 = arith.constant 0 : i32
    return %c0_i32, %c0_i32_0 : i32, i32
  }
  func.func @transform_6(%arg0: i32) -> (i32, i32, i32) {
    %c0_i32 = arith.constant 0 : i32
    %c0_i32_0 = arith.constant 0 : i32
    %c0_i32_1 = arith.constant 0 : i32
    return %arg0, %c0_i32, %c0_i32_0 : i32, i32, i32
  }
  func.func @transform_7(%arg0: i32) -> (i32, i32, i32) {
    %c0_i32 = arith.constant 0 : i32
    %c0_i32_0 = arith.constant 0 : i32
    %c0_i32_1 = arith.constant 0 : i32
    return %arg0, %c0_i32, %c0_i32_0 : i32, i32, i32
  }
}

</mosaic_0001>

<llo_original>
// kernel: tpu_custom_call.1
$region0: #{tpu_custom_call.1}
  #allocation0 [shape = 'u32[]', space=smem, size = 0x4, offset = 0x4, fixed_abs, tag = 'smem constant byte address 0x4 - core index']
  #allocation1 [shape = 'u32[144,128]{1,0:T(1,128)}', space=vmem, size = 0x12000, scoped, tag = 'internal scratch']
  %s0 = inlined_call_operand.vmem [shape: f32[2,19,32], index: 0, kind: input, shape index: {}]
  %s1 = inlined_call_operand.vmem [shape: f32[1,32], index: 1, kind: input, shape index: {}]
  %s2 = inlined_call_operand.vmem [shape: f32[1,32], index: 2, kind: input, shape index: {}]
  %s3 = inlined_call_operand.vmem [shape: f32[32,32], index: 3, kind: input, shape index: {}]
  %s4 = inlined_call_operand.vmem [shape: f32[32,64], index: 4, kind: input, shape index: {}]
  %s5 = inlined_call_operand.vmem [shape: f32[1,32], index: 5, kind: input, shape index: {}]
  %s6 = inlined_call_operand.hbm [shape: f32[2,16,32], index: 6, kind: output, shape index: {0}]
  %s7 = inlined_call_operand.hbm [shape: f32[2,1,16], index: 7, kind: output, shape index: {1}]
  %8 = xla_tuple %s6, %s7
  %s9 = sld [smem:[#allocation0]]
  $region65: #{tpu_custom_call.1} parent=0
    _
  %s11 = ssub.s32 1, %s9
  %s12 = scalar_select 0, %s11, %s9
  $region1: #{tpu_custom_call.1} parent=0
    #allocation2 [shape = 'u8[16384]{0}', space=vmem, size = 0x4000, scoped, tag = 'output window, operand 0']
    #allocation3 [shape = 's32[2]{0}', space=sflag, size = 0x8, scoped, tag = 'scoped memory for tpu_custom_call.1']
    #allocation4 [shape = 'u8[1024]{0}', space=vmem, size = 0x400, scoped, tag = 'output window, operand 1']
    #allocation5 [shape = 's32[2]{0}', space=sflag, size = 0x8, scoped, tag = 'scoped memory for tpu_custom_call.1']
    %13 = vsyncpa [#allocation3], 0
    %s14 = scalar_lea.sflag [#allocation3], 1
    %15 = vsyncpa %s14, 0
    %16 = vsyncpa [#allocation5], 0
    %s17 = scalar_lea.sflag [#allocation5], 1
    %18 = vsyncpa %s17, 0
    loop: start=0, step=1, limit=4
    $region2: #{tpu_custom_call.1} parent=1 // loop_pre_header
      _
    $region3: #{tpu_custom_call.1} parent=1 // loop_header
      %s20 = sphi 0, %s24
      %p21 = scmp.ge.s32.totalorder %s20, 4
      %s30 = sphi 0, %s32
      %s33 = sphi 0, %s30
      %s34 = sphi 0, %s33
      %s50 = sphi 0, %s34
      %s54 = sphi 0, %s54
      %s56 = sphi 0, %s54
      %s57 = sphi 0, %s56
      %s71 = sphi 0, %s57
      %s75 = sphi 0, %s75
      %s77 = sphi 0, %s75
      %s78 = sphi 0, %s77
      %s92 = sphi 0, %s78
      %s96 = sphi 0, %s96
      %s98 = sphi 0, %s96
      %s99 = sphi 0, %s98
      %s113 = sphi 0, %s99
      %s117 = sphi 0, %s117
      %s119 = sphi 0, %s117
      %s120 = sphi 0, %s119
      %s134 = sphi 0, %s120
      %s138 = sphi 0, %s138
      %s140 = sphi 0, %s138
      %s141 = sphi 0, %s140
      %s155 = sphi 0, %s141
      %s161 = sphi 0, %s163
      %s164 = sphi 0, %s161
      %s165 = sphi 0, %s164
      %s181 = sphi 0, %s165
      %s187 = sphi 0, %s189
      %s190 = sphi 0, %s187
      %s191 = sphi 0, %s190
      %s207 = sphi 0, %s191
    $region4: #{tpu_custom_call.1} parent=1 // loop_header_branch
      %23 = sbr.rel (%p21) target = $region8
    $region5: #{tpu_custom_call.1} parent=1 // loop_body
      %s25 = ssub.s32 %s20, 1
      %s26 = ssub.s32 %s20, 2
      %s27 = sadd.s32 %s20, 1
      %s28 = ssub.s32 %s20, %s27
      %p29 = scmp.eq.s32.totalorder %s28, 0
      %s31 = sadd.s32 %s30, 1
      %s32 = scalar_select %p29, %s30, %s31
      %p35 = pneg %p29
      %p36 = scmp.eq.s32.totalorder %s20, 1
      %p37 = por %p35, %p36
      %p38 = scmp.ne.s32.totalorder %s30, %s33
      %p39 = scmp.eq.s32.totalorder %s20, 0
      %p40 = por %p38, %p39
      %p41 = scmp.ne.s32.totalorder %s30, %s33
      %p42 = scmp.eq.s32.totalorder %s25, 1
      %p43 = por %p41, %p42
      %p44 = scmp.ne.s32.totalorder %s33, %s34
      %p45 = scmp.eq.s32.totalorder %s25, 0
      %p46 = por %p44, %p45
      %p47 = scmp.ne.s32.totalorder %s33, %s34
      %p48 = scmp.eq.s32.totalorder %s26, 1
      %p49 = por %p47, %p48
      %p51 = scmp.ne.s32.totalorder %s34, %s50
      %p52 = scmp.eq.s32.totalorder %s26, 0
      %p53 = por %p51, %p52
      %s55 = sadd.s32 %s54, 1
      %p58 = scmp.eq.s32.totalorder %s20, 1
      %p59 = scmp.ne.s32.totalorder %s54, %s56
      %p60 = scmp.eq.s32.totalorder %s20, 0
      %p61 = por %p59, %p60
      %p62 = scmp.ne.s32.totalorder %s54, %s56
      %p63 = scmp.eq.s32.totalorder %s25, 1
      %p64 = por %p62, %p63
      %p65 = scmp.ne.s32.totalorder %s56, %s57
      %p66 = scmp.eq.s32.totalorder %s25, 0
      %p67 = por %p65, %p66
      %p68 = scmp.ne.s32.totalorder %s56, %s57
      %p69 = scmp.eq.s32.totalorder %s26, 1
      %p70 = por %p68, %p69
      %p72 = scmp.ne.s32.totalorder %s57, %s71
      %p73 = scmp.eq.s32.totalorder %s26, 0
      %p74 = por %p72, %p73
      %s76 = sadd.s32 %s75, 1
      %p79 = scmp.eq.s32.totalorder %s20, 1
      %p80 = scmp.ne.s32.totalorder %s75, %s77
      %p81 = scmp.eq.s32.totalorder %s20, 0
      %p82 = por %p80, %p81
      %p83 = scmp.ne.s32.totalorder %s75, %s77
      %p84 = scmp.eq.s32.totalorder %s25, 1
      %p85 = por %p83, %p84
      %p86 = scmp.ne.s32.totalorder %s77, %s78
      %p87 = scmp.eq.s32.totalorder %s25, 0
      %p88 = por %p86, %p87
      %p89 = scmp.ne.s32.totalorder %s77, %s78
      %p90 = scmp.eq.s32.totalorder %s26, 1
      %p91 = por %p89, %p90
      %p93 = scmp.ne.s32.totalorder %s78, %s92
      %p94 = scmp.eq.s32.totalorder %s26, 0
      %p95 = por %p93, %p94
      %s97 = sadd.s32 %s96, 1
      %p100 = scmp.eq.s32.totalorder %s20, 1
      %p101 = scmp.ne.s32.totalorder %s96, %s98
      %p102 = scmp.eq.s32.totalorder %s20, 0
      %p103 = por %p101, %p102
      %p104 = scmp.ne.s32.totalorder %s96, %s98
      %p105 = scmp.eq.s32.totalorder %s25, 1
      %p106 = por %p104, %p105
      %p107 = scmp.ne.s32.totalorder %s98, %s99
      %p108 = scmp.eq.s32.totalorder %s25, 0
      %p109 = por %p107, %p108
      %p110 = scmp.ne.s32.totalorder %s98, %s99
      %p111 = scmp.eq.s32.totalorder %s26, 1
      %p112 = por %p110, %p111
      %p114 = scmp.ne.s32.totalorder %s99, %s113
      %p115 = scmp.eq.s32.totalorder %s26, 0
      %p116 = por %p114, %p115
      %s118 = sadd.s32 %s117, 1
      %p121 = scmp.eq.s32.totalorder %s20, 1
      %p122 = scmp.ne.s32.totalorder %s117, %s119
      %p123 = scmp.eq.s32.totalorder %s20, 0
      %p124 = por %p122, %p123
      %p125 = scmp.ne.s32.totalorder %s117, %s119
      %p126 = scmp.eq.s32.totalorder %s25, 1
      %p127 = por %p125, %p126
      %p128 = scmp.ne.s32.totalorder %s119, %s120
      %p129 = scmp.eq.s32.totalorder %s25, 0
      %p130 = por %p128, %p129
      %p131 = scmp.ne.s32.totalorder %s119, %s120
      %p132 = scmp.eq.s32.totalorder %s26, 1
      %p133 = por %p131, %p132
      %p135 = scmp.ne.s32.totalorder %s120, %s134
      %p136 = scmp.eq.s32.totalorder %s26, 0
      %p137 = por %p135, %p136
      %s139 = sadd.s32 %s138, 1
      %p142 = scmp.eq.s32.totalorder %s20, 1
      %p143 = scmp.ne.s32.totalorder %s138, %s140
      %p144 = scmp.eq.s32.totalorder %s20, 0
      %p145 = por %p143, %p144
      %p146 = scmp.ne.s32.totalorder %s138, %s140
      %p147 = scmp.eq.s32.totalorder %s25, 1
      %p148 = por %p146, %p147
      %p149 = scmp.ne.s32.totalorder %s140, %s141
      %p150 = scmp.eq.s32.totalorder %s25, 0
      %p151 = por %p149, %p150
      %p152 = scmp.ne.s32.totalorder %s140, %s141
      %p153 = scmp.eq.s32.totalorder %s26, 1
      %p154 = por %p152, %p153
      %p156 = scmp.ne.s32.totalorder %s141, %s155
      %p157 = scmp.eq.s32.totalorder %s26, 0
      %p158 = por %p156, %p157
      %s159 = ssub.s32 %s20, %s27
      %p160 = scmp.eq.s32.totalorder %s159, 0
      %s162 = sadd.s32 %s161, 1
      %s163 = scalar_select %p160, %s161, %s162
      %p166 = pneg %p160
      %p167 = scmp.eq.s32.totalorder %s20, 1
      %p168 = por %p166, %p167
      %p169 = scmp.ne.s32.totalorder %s161, %s164
      %p170 = scmp.eq.s32.totalorder %s20, 0
      %p171 = por %p169, %p170
      %p172 = scmp.ne.s32.totalorder %s161, %s164
      %p173 = scmp.eq.s32.totalorder %s25, 1
      %p174 = por %p172, %p173
      %p175 = scmp.ne.s32.totalorder %s164, %s165
      %p176 = scmp.eq.s32.totalorder %s25, 0
      %p177 = por %p175, %p176
      %p178 = scmp.ne.s32.totalorder %s164, %s165
      %p179 = scmp.eq.s32.totalorder %s26, 1
      %p180 = por %p178, %p179
      %p182 = scmp.ne.s32.totalorder %s165, %s181
      %p183 = scmp.eq.s32.totalorder %s26, 0
      %p184 = por %p182, %p183
      %s185 = ssub.s32 %s20, %s27
      %p186 = scmp.eq.s32.totalorder %s185, 0
      %s188 = sadd.s32 %s187, 1
      %s189 = scalar_select %p186, %s187, %s188
      %p192 = pneg %p186
      %p193 = scmp.eq.s32.totalorder %s20, 1
      %p194 = por %p192, %p193
      %p195 = scmp.ne.s32.totalorder %s187, %s190
      %p196 = scmp.eq.s32.totalorder %s20, 0
      %p197 = por %p195, %p196
      %p198 = scmp.ne.s32.totalorder %s187, %s190
      %p199 = scmp.eq.s32.totalorder %s25, 1
      %p200 = por %p198, %p199
      %p201 = scmp.ne.s32.totalorder %s190, %s191
      %p202 = scmp.eq.s32.totalorder %s25, 0
      %p203 = por %p201, %p202
      %p204 = scmp.ne.s32.totalorder %s190, %s191
      %p205 = scmp.eq.s32.totalorder %s26, 1
      %p206 = por %p204, %p205
      %p208 = scmp.ne.s32.totalorder %s191, %s207
      %p209 = scmp.eq.s32.totalorder %s26, 0
      %p210 = por %p208, %p209
      %p211 = scmp.le.s32.totalorder 1, %s20
      %p212 = scmp.lt.s32.totalorder %s20, 3
      %p213 = pnand %p211, %p212
      %p214 = pneg %p213
      // Predicated region
      $region9: #{tpu_custom_call.1} parent=5 // pred_check
        _
      $region10: #{tpu_custom_call.1} parent=5 // pred_check_branch
        %216 = sbr.rel (%p213) target = $region12
      $region11: #{tpu_custom_call.1} parent=5 // pred_region
        %s217 = ssub.s32 %s20, 1
        // Predicated region
        $region13: #{tpu_custom_call.1} parent=11 // pred_check
          %p218 = pneg %p67
        $region14: #{tpu_custom_call.1} parent=11 // pred_check_branch
          %220 = sbr.rel (%p218) target = $region16
        $region15: #{tpu_custom_call.1} parent=11 // pred_region
          _
        $region16: #{tpu_custom_call.1} parent=11 // pred_fallthru
          _
        // Predicated region
        $region17: #{tpu_custom_call.1} parent=11 // pred_check
          %p221 = pneg %p88
        $region18: #{tpu_custom_call.1} parent=11 // pred_check_branch
          %223 = sbr.rel (%p221) target = $region20
        $region19: #{tpu_custom_call.1} parent=11 // pred_region
          _
        $region20: #{tpu_custom_call.1} parent=11 // pred_fallthru
          _
        // Predicated region
        $region21: #{tpu_custom_call.1} parent=11 // pred_check
          %p224 = pneg %p109
        $region22: #{tpu_custom_call.1} parent=11 // pred_check_branch
          %226 = sbr.rel (%p224) target = $region24
        $region23: #{tpu_custom_call.1} parent=11 // pred_region
          _
        $region24: #{tpu_custom_call.1} parent=11 // pred_fallthru
          _
        // Predicated region
        $region25: #{tpu_custom_call.1} parent=11 // pred_check
          %p227 = pneg %p130
        $region26: #{tpu_custom_call.1} parent=11 // pred_check_branch
          %229 = sbr.rel (%p227) target = $region28
        $region27: #{tpu_custom_call.1} parent=11 // pred_region
          _
        $region28: #{tpu_custom_call.1} parent=11 // pred_fallthru
          _
        // Predicated region
        $region29: #{tpu_custom_call.1} parent=11 // pred_check
          %p230 = pneg %p151
        $region30: #{tpu_custom_call.1} parent=11 // pred_check_branch
          %232 = sbr.rel (%p230) target = $region32
        $region31: #{tpu_custom_call.1} parent=11 // pred_region
          _
        $region32: #{tpu_custom_call.1} parent=11 // pred_fallthru
          _
      $region12: #{tpu_custom_call.1} parent=5 // pred_fallthru
        _
      %p233 = scmp.lt.s32.totalorder %s20, 2
      // Predicated region
      $region33: #{tpu_custom_call.1} parent=5 // pred_check
        %p234 = pneg %p233
      $region34: #{tpu_custom_call.1} parent=5 // pred_check_branch
        %236 = sbr.rel (%p234) target = $region36
      $region35: #{tpu_custom_call.1} parent=5 // pred_region
        // Predicated region
        $region37: #{tpu_custom_call.1} parent=35 // pred_check
          %p237 = pneg %p40
        $region38: #{tpu_custom_call.1} parent=35 // pred_check_branch
          %239 = sbr.rel (%p237) target = $region40
        $region39: #{tpu_custom_call.1} parent=35 // pred_region
          %p240 = scmp.lt.s32.totalorder %s20, 1
          %s241 = scalar_select %p240, %s20, 1
          %s242 = smul.addr %s241, 3
          %s243 = smul.addr %s242, 8
          %s244 = scalar_lea.vmem %s0, %s243
        $region40: #{tpu_custom_call.1} parent=35 // pred_fallthru
          _
      $region36: #{tpu_custom_call.1} parent=5 // pred_fallthru
        _
      %p245 = scmp.le.s32.totalorder 1, %s20
      %p246 = scmp.lt.s32.totalorder %s20, 3
      %p247 = pnand %p245, %p246
      %p248 = pneg %p247
      // Predicated region
      $region41: #{tpu_custom_call.1} parent=5 // pred_check
        _
      $region42: #{tpu_custom_call.1} parent=5 // pred_check_branch
        %250 = sbr.rel (%p247) target = $region44
      $region43: #{tpu_custom_call.1} parent=5 // pred_region
        %s251 = ssub.s32 %s20, 1
        %p252 = scmp.lt.s32.totalorder %s25, 1
        %s253 = scalar_select %p252, %s25, 1
        %s254 = smul.addr %s253, 3
        %s255 = smul.addr %s254, 8
        %s256 = scalar_lea.vmem %s0, %s255
        %p257 = pneg %p46
        %p258 = pneg %p43
        %p259 = pneg %p67
        %p260 = pneg %p64
        %p261 = pneg %p88
        %p262 = pneg %p85
        %p263 = pneg %p109
        %p264 = pneg %p106
        %p265 = pneg %p130
        %p266 = pneg %p127
        %p267 = pneg %p151
        %p268 = pneg %p148
        %p269 = pneg %p177
        %p270 = pneg %p174
        %s271 = sand.u32 %s164, 1
        %s272 = scalar_lea.sflag [#allocation3], %s271
        %s273 = sand.u32 %s164, 1
        %s274 = smul.addr %s273, 16
        %s275 = scalar_lea.vmem [#allocation2], %s274
        %p276 = pneg %p203
        %p277 = pneg %p200
        %s278 = sand.u32 %s190, 1
        %s279 = scalar_lea.sflag [#allocation5], %s278
        %s280 = sand.u32 %s190, 1
        %s281 = scalar_lea.vmem [#allocation4], %s280
        %p282 = scmp.lt.s32.totalorder %s25, 1
        %s283 = scalar_select %p282, %s25, 1
        %s284 = smul.addr %s283, 3
        %s285 = smul.addr %s284, 8
        %s286 = scalar_lea.vmem %s0, %s285
        %v287 = vld [vmem:[%s1] sm:$0x1]
        %v288 = vld [vmem:[%s2] sm:$0x1]
        %v289 = vld [vmem:[%s3] sm:$0xff]
        %v290 = vld [vmem:[%s3 + $0x8] sm:$0xff]
        %v291 = vld [vmem:[%s3 + $0x10] sm:$0xff]
        %v292 = vld [vmem:[%s3 + $0x18] sm:$0xff]
        %v293 = vld [vmem:[%s4] sm:$0xff]
        %v294 = vld [vmem:[%s4 + $0x8] sm:$0xff]
        %v295 = vld [vmem:[%s4 + $0x10] sm:$0xff]
        %v296 = vld [vmem:[%s4 + $0x18] sm:$0xff]
        %v297 = vld [vmem:[%s5] sm:$0x1]
        %v298 = vld [vmem:[%s286] sm:$0xff]
        %v299 = vld [vmem:[%s286 + $0x8] sm:$0xff]
        %v300 = vld [vmem:[%s286 + $0x10] sm:$0x7]
        %vm301 = vcmask 261120
        %v302 = vsel %vm301, %v298, 0.0
        %303 = vadd.xlane.f32.xlu0 %v302
        %v304 = vpop.xlane.xlu0 %303
        %v305 = vsel %vm301, %v299, 0.0
        %306 = vadd.xlane.f32.xlu0 %v305
        %v307 = vpop.xlane.xlu0 %306
        %vm308 = vcmask 256000
        %v309 = vsel %vm308, %v300, 0.0
        %310 = vadd.xlane.f32.xlu0 %v309
        %v311 = vpop.xlane.xlu0 %310
        %v312 = vrcp.pop 32.0
        %v313 = vmul.f32 %v304, %v312
        %v314 = vmul.f32 %v307, %v312
        %v315 = vmul.f32 %v311, %v312
        %v316 = vsub.f32 %v298, %v313
        %v317 = vsub.f32 %v299, %v314
        %v318 = vsub.f32 %v300, %v315
        %v319 = vmul.f32 %v316, %v316
        %v320 = vmul.f32 %v317, %v317
        %v321 = vmul.f32 %v318, %v318
        %v322 = vsel %vm301, %v319, 0.0
        %323 = vadd.xlane.f32.xlu0 %v322
        %v324 = vpop.xlane.xlu0 %323
        %v325 = vsel %vm301, %v320, 0.0
        %326 = vadd.xlane.f32.xlu0 %v325
        %v327 = vpop.xlane.xlu0 %326
        %v328 = vsel %vm308, %v321, 0.0
        %329 = vadd.xlane.f32.xlu0 %v328
        %v330 = vpop.xlane.xlu0 %329
        %v331 = vmul.f32 %v324, %v312
        %v332 = vmul.f32 %v327, %v312
        %v333 = vmul.f32 %v330, %v312
        %v334 = vadd.f32 %v331, 1e-05
        %v335 = vadd.f32 %v332, 1e-05
        %v336 = vadd.f32 %v333, 1e-05
        %v337 = vrsqrt.pop %v334
        %v338 = vrsqrt.pop %v335
        %v339 = vrsqrt.pop %v336
        %v340 = vmul.f32 %v316, %v337
        %v341 = vmul.f32 %v317, %v338
        %v342 = vmul.f32 %v318, %v339
        %v344 = vlaneseq
        %v345 = vshrl.u32 %v344, 7
        %v346 = vsub.s32 0, %v345
        %v347 = vrot.slane %v287, %v346
        %v349 = vmul.f32 %v340, %v347
        %v350 = vmul.f32 %v341, %v347
        %v351 = vmul.f32 %v342, %v347
        %v353 = vlaneseq
        %v354 = vshrl.u32 %v353, 7
        %v355 = vsub.s32 0, %v354
        %v356 = vrot.slane %v288, %v355
        %v358 = vadd.f32 %v349, %v356
        %v359 = vadd.f32 %v350, %v356
        %v360 = vadd.f32 %v351, %v356
        %v362 = vrot.slane %v360, 1
        %v363 = vsel %vm301, %v362, 0
        %365 = vmatprep.subr.mxu0 0.0
        %366 = vmatpush1.msra.mxu0 0.0
        %367 = vmatprep.subr.mxu0 0.0
        %368 = vmatpush1.msra.mxu0 0.0
        %369 = vmatprep.subr.mxu0 0.0
        %370 = vmatpush1.msra.mxu0 0.0
        %371 = vmatprep.subr.mxu0 0.0
        %372 = vmatpush1.msra.mxu0 0.0
        %373 = vmatprep.subr.mxu0 0.0
        %374 = vmatpush1.msra.mxu0 0.0
        %375 = vmatprep.subr.mxu0 0.0
        %376 = vmatpush1.msra.mxu0 0.0
        %377 = vmatprep.subr.mxu0 0.0
        %378 = vmatpush1.msra.mxu0 0.0
        %379 = vmatprep.subr.mxu0 0.0
        %380 = vmatpush1.msra.mxu0 0.0
        %381 = vmatprep.subr.mxu0 0.0
        %382 = vmatpush1.msra.mxu0 0.0
        %383 = vmatprep.subr.mxu0 0.0
        %384 = vmatpush1.msra.mxu0 0.0
        %385 = vmatprep.subr.mxu0 0.0
        %386 = vmatpush1.msra.mxu0 0.0
        %387 = vmatprep.subr.mxu0 0.0
        %388 = vmatpush1.msra.mxu0 0.0
        %389 = vmatprep.subr.mxu0 0.0
        %390 = vmatpush1.msra.mxu0 %v296
        %391 = vmatprep.subr.mxu0 0.0
        %392 = vmatpush1.msra.mxu0 %v295
        %393 = vmatprep.subr.mxu0 0.0
        %394 = vmatpush1.msra.mxu0 %v294
        %395 = vmatprep.subr.mxu0 0.0
        %396 = vmatpush1.msra.mxu0 %v293
        %397 = vmatprep.subr.mxu0 0.0
        %398 = vmatpush2.msra.mxu0 0.0
        %399 = vmatprep.subr.mxu0 0.0
        %400 = vmatpush2.msra.mxu0 0.0
        %401 = vmatprep.subr.mxu0 0.0
        %402 = vmatpush2.msra.mxu0 0.0
        %403 = vmatprep.subr.mxu0 0.0
        %404 = vmatpush2.msra.mxu0 0.0
        %405 = vmatprep.subr.mxu0 0.0
        %406 = vmatpush2.msra.mxu0 0.0
        %407 = vmatprep.subr.mxu0 0.0
        %408 = vmatpush2.msra.mxu0 0.0
        %409 = vmatprep.subr.mxu0 0.0
        %410 = vmatpush2.msra.mxu0 0.0
        %411 = vmatprep.subr.mxu0 0.0
        %412 = vmatpush2.msra.mxu0 0.0
        %413 = vmatprep.subr.mxu0 0.0
        %414 = vmatpush2.msra.mxu0 0.0
        %415 = vmatprep.subr.mxu0 0.0
        %416 = vmatpush2.msra.mxu0 0.0
        %417 = vmatprep.subr.mxu0 0.0
        %418 = vmatpush2.msra.mxu0 0.0
        %419 = vmatprep.subr.mxu0 0.0
        %420 = vmatpush2.msra.mxu0 0.0
        %421 = vmatprep.subr.mxu0 0.0
        %422 = vmatpush2.msra.mxu0 0.0
        %423 = vmatprep.subr.mxu0 0.0
        %424 = vmatpush2.msra.mxu0 0.0
        %425 = vmatprep.subr.mxu0 0.0
        %426 = vmatpush2.msra.mxu0 0.0
        %427 = vmatprep.subr.mxu0 0.0
        %428 = vmatpush2.msra.mxu0 0.0
        %429 = vmatprep.mubr.f32.mxu0 0.0
        %430 = vmatmul.mubr.f32.gmra.mxu0 %v363
        %v431 = vpop.f32.mrf.mxu0
        %v432 = vadd.f32 0.0, %v431
        %v433 = vpop.f32.mrf.mxu0
        %434 = vdwg.mxu0
        %v436 = vsel %vm301, %v358, 0
        %v439 = vsel %vm301, %v359, 0
        %v441 = vsel %vm301, %v360, 0
        %443 = vmatprep.subr.mxu0 0.0
        %444 = vmatpush1.msra.mxu0 0.0
        %445 = vmatprep.subr.mxu0 0.0
        %446 = vmatpush1.msra.mxu0 0.0
        %447 = vmatprep.subr.mxu0 0.0
        %448 = vmatpush1.msra.mxu0 0.0
        %449 = vmatprep.subr.mxu0 0.0
        %450 = vmatpush1.msra.mxu0 0.0
        %451 = vmatprep.subr.mxu0 0.0
        %452 = vmatpush1.msra.mxu0 0.0
        %453 = vmatprep.subr.mxu0 0.0
        %454 = vmatpush1.msra.mxu0 0.0
        %455 = vmatprep.subr.mxu0 0.0
        %456 = vmatpush1.msra.mxu0 0.0
        %457 = vmatprep.subr.mxu0 0.0
        %458 = vmatpush1.msra.mxu0 0.0
        %459 = vmatprep.subr.mxu0 0.0
        %460 = vmatpush1.msra.mxu0 0.0
        %461 = vmatprep.subr.mxu0 0.0
        %462 = vmatpush1.msra.mxu0 0.0
        %463 = vmatprep.subr.mxu0 0.0
        %464 = vmatpush1.msra.mxu0 0.0
        %465 = vmatprep.subr.mxu0 0.0
        %466 = vmatpush1.msra.mxu0 0.0
        %467 = vmatprep.subr.mxu0 0.0
        %468 = vmatpush1.msra.mxu0 %v292
        %469 = vmatprep.subr.mxu0 0.0
        %470 = vmatpush1.msra.mxu0 %v291
        %471 = vmatprep.subr.mxu0 0.0
        %472 = vmatpush1.msra.mxu0 %v290
        %473 = vmatprep.subr.mxu0 0.0
        %474 = vmatpush1.msra.mxu0 %v289
        %475 = vmatprep.subr.mxu0 0.0
        %476 = vmatpush2.msra.mxu0 0.0
        %477 = vmatprep.subr.mxu0 0.0
        %478 = vmatpush2.msra.mxu0 0.0
        %479 = vmatprep.subr.mxu0 0.0
        %480 = vmatpush2.msra.mxu0 0.0
        %481 = vmatprep.subr.mxu0 0.0
        %482 = vmatpush2.msra.mxu0 0.0
        %483 = vmatprep.subr.mxu0 0.0
        %484 = vmatpush2.msra.mxu0 0.0
        %485 = vmatprep.subr.mxu0 0.0
        %486 = vmatpush2.msra.mxu0 0.0
        %487 = vmatprep.subr.mxu0 0.0
        %488 = vmatpush2.msra.mxu0 0.0
        %489 = vmatprep.subr.mxu0 0.0
        %490 = vmatpush2.msra.mxu0 0.0
        %491 = vmatprep.subr.mxu0 0.0
        %492 = vmatpush2.msra.mxu0 0.0
        %493 = vmatprep.subr.mxu0 0.0
        %494 = vmatpush2.msra.mxu0 0.0
        %495 = vmatprep.subr.mxu0 0.0
        %496 = vmatpush2.msra.mxu0 0.0
        %497 = vmatprep.subr.mxu0 0.0
        %498 = vmatpush2.msra.mxu0 0.0
        %499 = vmatprep.subr.mxu0 0.0
        %500 = vmatpush2.msra.mxu0 0.0
        %501 = vmatprep.subr.mxu0 0.0
        %502 = vmatpush2.msra.mxu0 0.0
        %503 = vmatprep.subr.mxu0 0.0
        %504 = vmatpush2.msra.mxu0 0.0
        %505 = vmatprep.subr.mxu0 0.0
        %506 = vmatpush2.msra.mxu0 0.0
        %507 = vmatprep.mubr.f32.mxu0 0.0
        %508 = vmatmul.mubr.f32.gmra.mxu0 %v436
        %v509 = vpop.f32.mrf.mxu0
        %v510 = vadd.f32 0.0, %v509
        %v511 = vpop.f32.mrf.mxu0
        %512 = vmatprep.mubr.f32.mxu0 0.0
        %513 = vmatmul.mubr.f32.gmra.mxu0 %v439
        %v514 = vpop.f32.mrf.mxu0
        %v515 = vadd.f32 0.0, %v514
        %v516 = vpop.f32.mrf.mxu0
        %517 = vmatprep.mubr.f32.mxu0 0.0
        %518 = vmatmul.mubr.f32.gmra.mxu0 %v441
        %v519 = vpop.f32.mrf.mxu0
        %v520 = vadd.f32 0.0, %v519
        %v521 = vpop.f32.mrf.mxu0
        %522 = vdwg.mxu0
        %v523 = vlaneseq
        %v524 = vshrl.u32 %v523, 7
        %v525 = vsub.s32 0, %v524
        %v526 = vrot.slane %v432, %v525
        %v527 = vmul.f32 %v510, %v526
        %v528 = vmul.f32 %v515, %v526
        %v529 = vmul.f32 %v520, %v526
        %v530 = vsel %vm301, %v527, 0.0
        %531 = vadd.xlane.f32.xlu0 %v530
        %v532 = vpop.xlane.xlu0 %531
        %v533 = vsel %vm301, %v528, 0.0
        %534 = vadd.xlane.f32.xlu0 %v533
        %v535 = vpop.xlane.xlu0 %534
        %v536 = vsel %vm308, %v529, 0.0
        %537 = vadd.xlane.f32.xlu0 %v536
        %v538 = vpop.xlane.xlu0 %537
        %v540 = vsel %vm301, %v432, 0
        %v543 = vsel %vm301, %v510, 0
        %v546 = vsel %vm301, %v515, 0
        %v549 = vsel %vm301, %v520, 0
        %551 = vmatprep.subr.mxu0 0.0
        %552 = vmatpush1.xpose.msra.mxu0 0.0
        %553 = vmatprep.subr.mxu0 0.0
        %554 = vmatpush1.xpose.msra.mxu0 0.0
        %555 = vmatprep.subr.mxu0 0.0
        %556 = vmatpush1.xpose.msra.mxu0 0.0
        %557 = vmatprep.subr.mxu0 0.0
        %558 = vmatpush1.xpose.msra.mxu0 0.0
        %559 = vmatprep.subr.mxu0 0.0
        %560 = vmatpush1.xpose.msra.mxu0 0.0
        %561 = vmatprep.subr.mxu0 0.0
        %562 = vmatpush1.xpose.msra.mxu0 0.0
        %563 = vmatprep.subr.mxu0 0.0
        %564 = vmatpush1.xpose.msra.mxu0 0.0
        %565 = vmatprep.subr.mxu0 0.0
        %566 = vmatpush1.xpose.msra.mxu0 0.0
        %567 = vmatprep.subr.mxu0 0.0
        %568 = vmatpush1.xpose.msra.mxu0 0.0
        %569 = vmatprep.subr.mxu0 0.0
        %570 = vmatpush1.xpose.msra.mxu0 0.0
        %571 = vmatprep.subr.mxu0 0.0
        %572 = vmatpush1.xpose.msra.mxu0 0.0
        %573 = vmatprep.subr.mxu0 0.0
        %574 = vmatpush1.xpose.msra.mxu0 0.0
        %575 = vmatprep.subr.mxu0 0.0
        %576 = vmatpush1.xpose.msra.mxu0 0.0
        %577 = vmatprep.subr.mxu0 0.0
        %578 = vmatpush1.xpose.msra.mxu0 %v549
        %579 = vmatprep.subr.mxu0 0.0
        %580 = vmatpush1.xpose.msra.mxu0 %v546
        %581 = vmatprep.subr.mxu0 0.0
        %582 = vmatpush1.xpose.msra.mxu0 %v543
        %583 = vmatprep.subr.mxu0 0.0
        %584 = vmatpush2.xpose.msra.mxu0 0.0
        %585 = vmatprep.subr.mxu0 0.0
        %586 = vmatpush2.xpose.msra.mxu0 0.0
        %587 = vmatprep.subr.mxu0 0.0
        %588 = vmatpush2.xpose.msra.mxu0 0.0
        %589 = vmatprep.subr.mxu0 0.0
        %590 = vmatpush2.xpose.msra.mxu0 0.0
        %591 = vmatprep.subr.mxu0 0.0
        %592 = vmatpush2.xpose.msra.mxu0 0.0
        %593 = vmatprep.subr.mxu0 0.0
        %594 = vmatpush2.xpose.msra.mxu0 0.0
        %595 = vmatprep.subr.mxu0 0.0
        %596 = vmatpush2.xpose.msra.mxu0 0.0
        %597 = vmatprep.subr.mxu0 0.0
        %598 = vmatpush2.xpose.msra.mxu0 0.0
        %599 = vmatprep.subr.mxu0 0.0
        %600 = vmatpush2.xpose.msra.mxu0 0.0
        %601 = vmatprep.subr.mxu0 0.0
        %602 = vmatpush2.xpose.msra.mxu0 0.0
        %603 = vmatprep.subr.mxu0 0.0
        %604 = vmatpush2.xpose.msra.mxu0 0.0
        %605 = vmatprep.subr.mxu0 0.0
        %606 = vmatpush2.xpose.msra.mxu0 0.0
        %607 = vmatprep.subr.mxu0 0.0
        %608 = vmatpush2.xpose.msra.mxu0 0.0
        %609 = vmatprep.subr.mxu0 0.0
        %610 = vmatpush2.xpose.msra.mxu0 0.0
        %611 = vmatprep.subr.mxu0 0.0
        %612 = vmatpush2.xpose.msra.mxu0 0.0
        %613 = vmatprep.subr.mxu0 0.0
        %614 = vmatpush2.xpose.msra.mxu0 0.0
        %615 = vmatprep.mubr.f32.mxu0 0.0
        %616 = vmatmul.mubr.f32.gmra.mxu0 %v540
        %v617 = vpop.f32.mrf.mxu0
        %v618 = vadd.f32 0.0, %v617
        %v619 = vpop.f32.mrf.mxu0
        %620 = vdwg.mxu0
        %v621 = vxor.u32 %v532, 2147483648
        %v622 = vxor.u32 %v535, 2147483648
        %v623 = vxor.u32 %v538, 2147483648
        %v624 = vmul.f32 %v621, 1.442695
        %v625 = vpow.pop %v624
        %v626 = vmul.f32 %v622, 1.442695
        %v627 = vpow.pop %v626
        %v628 = vmul.f32 %v623, 1.442695
        %v629 = vpow.pop %v628
        %v630 = vadd.f32 %v625, 1.0
        %v631 = vadd.f32 %v627, 1.0
        %v632 = vadd.f32 %v629, 1.0
        %v633 = vrcp.pop %v630
        %v634 = vmul.f32 1.0, %v633
        %v635 = vrcp.pop %v631
        %v636 = vmul.f32 1.0, %v635
        %v637 = vrcp.pop %v632
        %v638 = vmul.f32 1.0, %v637
        %v639 = vxor.u32 %v618, 2147483648
        %v640 = vmul.f32 %v639, 1.442695
        %v641 = vpow.pop %v640
        %v642 = vadd.f32 %v641, 1.0
        %v643 = vrcp.pop %v642
        %v644 = vmul.f32 1.0, %v643
        %v645 = vmul.f32 %v634, %v526
        %v646 = vmul.f32 %v636, %v526
        %v647 = vmul.f32 %v638, %v526
        %v649 = vlaneseq
        %v650 = vshrl.u32 %v649, 7
        %v651 = vsub.s32 0, %v650
        %v652 = vrot.slane %v297, %v651
        %653 = vrot.lane.b32.xlu0 %v652, 32
        %v654 = vpop.permute.xlu0 %653
        %v656 = vadd.f32 %v645, %v654
        %v657 = vadd.f32 %v646, %v654
        %v658 = vadd.f32 %v647, %v654
        %662 = vrot.lane.b32.xlu0 %v298, 32
        %v663 = vpop.permute.xlu0 %662
        %664 = vrot.lane.b32.xlu0 %v299, 32
        %v665 = vpop.permute.xlu0 %664
        %666 = vrot.lane.b32.xlu0 %v300, 32
        %v667 = vpop.permute.xlu0 %666
        %v671 = vadd.f32 %v656, %v663
        %v672 = vadd.f32 %v657, %v665
        %v673 = vadd.f32 %v658, %v667
        %677 = vrot.lane.b32.xlu0 %v671, 96
        %v678 = vpop.permute.xlu0 %677
        %679 = vrot.lane.b32.xlu0 %v672, 96
        %v680 = vpop.permute.xlu0 %679
        %681 = vrot.lane.b32.xlu0 %v673, 96
        %v682 = vpop.permute.xlu0 %681
        %vm686 = vcmask 261121
        %687 = vst.msk [vmem:[%s275 - $0x1] sm:$0xfe] %vm686, %v678
        %688 = vst.msk [vmem:[%s275 + $0x7] sm:$0xff] %vm301, %v680
        %vm689 = vcmask 253952
        %690 = vst.msk [vmem:[%s275 + $0xf] sm:$0x1] %vm689, %v682
        %692 = vrot.lane.b32.xlu0 %v644, 127
        %v693 = vpop.permute.xlu0 %692
        %vm695 = vcmask 122880
        %696 = vst.msk [vmem:[%s281] sm:$0x1] %vm695, %v693
        %s697 = sand.u32 %s164, 1
        %s698 = scalar_lea.sflag [#allocation3], %s697
        %s699 = sand.u32 %s164, 1
        %s700 = smul.addr %s699, 16
        %s701 = scalar_lea.vmem [#allocation2], %s700
        %s702 = sand.u32 %s190, 1
        %s703 = scalar_lea.sflag [#allocation5], %s702
        %s704 = sand.u32 %s190, 1
        %s705 = scalar_lea.vmem [#allocation4], %s704
        // Predicated region
        $region45: #{tpu_custom_call.1} parent=43 // pred_check
          %p706 = pneg %p174
        $region46: #{tpu_custom_call.1} parent=43 // pred_check_branch
          %708 = sbr.rel (%p706) target = $region48
        $region47: #{tpu_custom_call.1} parent=43 // pred_region
          %s710 = ssub.s32 256, 256
          %711 = vsyncadd %s698, %s710
          %s712 = smul.addr %s25, 2
          %s713 = smul.addr %s712, 128
          %s714 = scalar_lea.hbm %s6, %s713
          %s715 = sshll.u32 %s701, 4
          %s716 = int_to_ptr.vmem [resolvable:$true] %s715
          %721 = dma.vmem_to_hbm [thread:$0]  %s716, 256, %s714, %s698, 128, 128, 8
        $region48: #{tpu_custom_call.1} parent=43 // pred_fallthru
          _
        // Predicated region
        $region49: #{tpu_custom_call.1} parent=43 // pred_check
          %p722 = pneg %p200
        $region50: #{tpu_custom_call.1} parent=43 // pred_check_branch
          %724 = sbr.rel (%p722) target = $region52
        $region51: #{tpu_custom_call.1} parent=43 // pred_region
          %s726 = ssub.s32 16, 16
          %727 = vsyncadd %s703, %s726
          %s728 = smul.addr %s25, 16
          %s729 = scalar_lea.hbm %s7, %s728
          %s731 = sshll.u32 %s705, 4
          %s732 = int_to_ptr.vmem [resolvable:$true] %s731
          %734 = dma.vmem_to_hbm [thread:$0]  %s732, 16, %s729, %s703
        $region52: #{tpu_custom_call.1} parent=43 // pred_fallthru
          _
      $region44: #{tpu_custom_call.1} parent=5 // pred_fallthru
        _
      %p735 = scmp.le.s32.totalorder 2, %s20
      // Predicated region
      $region53: #{tpu_custom_call.1} parent=5 // pred_check
        %p736 = pneg %p735
      $region54: #{tpu_custom_call.1} parent=5 // pred_check_branch
        %738 = sbr.rel (%p736) target = $region56
      $region55: #{tpu_custom_call.1} parent=5 // pred_region
        %s739 = ssub.s32 %s20, 2
        // Predicated region
        $region57: #{tpu_custom_call.1} parent=55 // pred_check
          %p740 = pneg %p180
        $region58: #{tpu_custom_call.1} parent=55 // pred_check_branch
          %742 = sbr.rel (%p740) target = $region60
        $region59: #{tpu_custom_call.1} parent=55 // pred_region
          %s743 = sand.u32 %s165, 1
          %s744 = scalar_lea.sflag [#allocation3], %s743
          %s745 = sand.u32 %s165, 1
          %s746 = smul.addr %s745, 16
          %s747 = scalar_lea.vmem [#allocation2], %s746
          %748 = dma.done %s744, 256
        $region60: #{tpu_custom_call.1} parent=55 // pred_fallthru
          _
        // Predicated region
        $region61: #{tpu_custom_call.1} parent=55 // pred_check
          %p749 = pneg %p206
        $region62: #{tpu_custom_call.1} parent=55 // pred_check_branch
          %751 = sbr.rel (%p749) target = $region64
        $region63: #{tpu_custom_call.1} parent=55 // pred_region
          %s752 = sand.u32 %s191, 1
          %s753 = scalar_lea.sflag [#allocation5], %s752
          %s754 = sand.u32 %s191, 1
          %s755 = scalar_lea.vmem [#allocation4], %s754
          %756 = dma.done %s753, 16
        $region64: #{tpu_custom_call.1} parent=55 // pred_fallthru
          _
      $region56: #{tpu_custom_call.1} parent=5 // pred_fallthru
        _
    $region6: #{tpu_custom_call.1} parent=1 // loop_footer
      %s24 = sadd.s32 1, %s20
    $region7: #{tpu_custom_call.1} parent=1 // loop_footer_branch
      %19 = sbr.rel target = $region3
    $region8: #{tpu_custom_call.1} parent=1 // loop_exit
      _
    %757 = vsyncpa [#allocation3], 1
    %s758 = scalar_lea.sflag [#allocation3], 1
    %759 = vsyncpa %s758, 1
    %760 = vsyncpa [#allocation5], 1
    %s761 = scalar_lea.sflag [#allocation5], 1
    %762 = vsyncpa %s761, 1

</llo_original>
